<compile_context>
chip_gen: v6e
topology: v6e:2x2x1
jax: 0.10.0
libtpu: 0.0.40
codegen_flags: <defaults>
</compile_context>

<pallas_src>
import jax
import jax.numpy as jnp
from jax.experimental import pallas as pl
from jax.experimental.pallas import tpu as pltpu


def _round_up(x, m):
    return (x + m - 1) // m * m


def _vmem_limit(footprint_bytes):
    # Generous headroom over the static block footprint, capped below v7x's
    # 64 MiB physical VMEM so the same value is safe on every generation.
    return int(min(max(4 * footprint_bytes, 16 << 20), 48 << 20))


# ---------------------------------------------------------------------------
# Kernel 1: tiled linear feature extractor  (B_pad, F_pad) @ (F_pad, D_fe) + b
#   - bf16 operands on the MXU, f32 accumulation (numerics tradeoff).
#   - accumulates directly into the resident f32 output block (no scratch);
#     bias is folded into the k==0 initialization.
# ---------------------------------------------------------------------------
def feature_extractor_pallas(x_bf16, w_bf16, b_f32, *, tm, tn, tk):
    Bp, Fp = x_bf16.shape
    Dp = w_bf16.shape[1]

    def kernel(x_ref, w_ref, b_ref, o_ref):
        @pl.when(pl.program_id(2) == 0)
        def _():
            o_ref[...] = jnp.broadcast_to(b_ref[...], o_ref.shape)

        o_ref[...] += jnp.dot(x_ref[...], w_ref[...],
                              preferred_element_type=jnp.float32)

    return pl.pallas_call(
        kernel,
        out_shape=jax.ShapeDtypeStruct((Bp, Dp), jnp.float32),
        grid_spec=pltpu.PrefetchScalarGridSpec(
            num_scalar_prefetch=0,
            grid=(Bp // tm, Dp // tn, Fp // tk),
            in_specs=[
                pl.BlockSpec((tm, tk), lambda i, j, k: (i, k)),
                pl.BlockSpec((tk, tn), lambda i, j, k: (k, j)),
                pl.BlockSpec((1, tn), lambda i, j, k: (0, j)),
            ],
            out_specs=pl.BlockSpec((tm, tn), lambda i, j, k: (i, j)),
        ),
        compiler_params=pltpu.CompilerParams(
            dimension_semantics=("parallel", "parallel", "arbitrary")),
    )(x_bf16, w_bf16, b_f32)


# ---------------------------------------------------------------------------
# Kernel 2: per-class sums and Gram matrices, class-tiled onto the MXU.
#   Per class tile (tc classes):
#     sums  = Ht @ S                                 : (tc,Ns)@(Ns,D)
#     grams = reshape((Ht ⊙ S^T) @ S, (tc, D, D))    : (tc*D,Ns)@(Ns,D)
#   S^T is formed in-kernel (XLU transpose of a small resident block) so the
#   support features are streamed from HBM exactly once.
# ---------------------------------------------------------------------------
def class_stats_pallas(support, onehot_t, *, tc=8):
    Ns, Ds = support.shape
    Cp = onehot_t.shape[0]            # multiple of tc

    def kernel(s_ref, ht_ref, sums_ref, gram_ref):
        S = s_ref[...]                                   # (Ns, Ds)  f32
        Ht = ht_ref[...]                                 # (tc, Ns)  f32

        # class sums: one dense MXU matmul per class tile
        sums_ref[...] = jnp.dot(Ht, S, preferred_element_type=jnp.float32)

        # class Grams: X[c*Ds+d, n] = h_c[n] * S[n, d]; gram = X @ S
        St = S.T                                         # (Ds, Ns)  XLU
        X = (Ht[:, None, :] * St[None, :, :]).reshape(tc * Ds, Ns)
        G = jnp.dot(X, S, preferred_element_type=jnp.float32)   # (tc*Ds, Ds)
        gram_ref[...] = G.reshape(tc, Ds, Ds)

    fp = 4 * (Ns * Ds + tc * Ns + tc * Ds + tc * Ds * Ds        # blocks
              + Ds * Ns + tc * Ds * Ns + tc * Ds * Ds)          # temporaries
    sums, grams = pl.pallas_call(
        kernel,
        out_shape=(
            jax.ShapeDtypeStruct((Cp, Ds), jnp.float32),
            jax.ShapeDtypeStruct((Cp, Ds, Ds), jnp.float32),
        ),
        grid_spec=pltpu.PrefetchScalarGridSpec(
            num_scalar_prefetch=0,
            grid=(Cp // tc,),
            in_specs=[
                pl.BlockSpec((Ns, Ds), lambda c: (0, 0)),        # resident
                pl.BlockSpec((tc, Ns), lambda c: (c, 0)),
            ],
            out_specs=(
                pl.BlockSpec((tc, Ds), lambda c: (c, 0)),
                pl.BlockSpec((tc, Ds, Ds), lambda c: (c, 0, 0)),
            ),
        ),
        compiler_params=pltpu.CompilerParams(
            dimension_semantics=("parallel",),
            vmem_limit_bytes=_vmem_limit(fp)),
    )(support, onehot_t)
    return sums, grams


# ---------------------------------------------------------------------------
# Kernel 3: QDA prediction.  Grid = (class tiles, query tiles), both parallel.
#   sigma_inv streams as bf16 (dominant HBM stream); Mahalanobis product is one
#   batched 'cnd,cde->cne' MXU contraction per (class, query) tile; the fused
#   epilogue is bias + coef * log(1 + dist * inv_common) with the per-class
#   scalars precomputed in plain JAX.
# ---------------------------------------------------------------------------
def qda_predict_pallas(query, mu, sigma_inv_bf16, bias_c, coef_c, invc_c,
                       *, tc, tq):
    Nq_pad, Dq = query.shape
    Cp = mu.shape[0]

    def kernel(q_ref, mu_ref, si_ref, b_ref, k_ref, ic_ref, o_ref):
        Q = q_ref[...]                                    # (tq, Dq)  f32
        MU = mu_ref[...]                                  # (tc, Dq)  f32
        diff = Q[None, :, :] - MU[:, None, :]             # (tc, tq, Dq) f32
        # bf16 MXU operands, f32 accumulation (numerics tradeoff vs f32 ref)
        t = jnp.einsum('cnd,cde->cne', diff.astype(jnp.bfloat16), si_ref[...],
                       preferred_element_type=jnp.float32)
        dist = jnp.sum(t * diff, axis=-1)                 # (tc, tq)
        # fused epilogue: one VPU fma around a single wide EUP log
        o_ref[...] = b_ref[...] + k_ref[...] * jnp.log(1.0 + dist * ic_ref[...])

    fp = (4 * (tq * Dq + tc * Dq + 3 * tc + tc * tq)      # f32 blocks
          + 2 * tc * Dq * Dq                              # bf16 sigma_inv block
          + 4 * 2 * tc * tq * Dq)                         # diff / t temporaries
    scores = pl.pallas_call(
        kernel,
        out_shape=jax.ShapeDtypeStruct((Cp, Nq_pad), jnp.float32),
        grid_spec=pltpu.PrefetchScalarGridSpec(
            num_scalar_prefetch=0,
            grid=(Cp // tc, Nq_pad // tq),
            in_specs=[
                pl.BlockSpec((tq, Dq), lambda c, q: (q, 0)),
                pl.BlockSpec((tc, Dq), lambda c, q: (c, 0)),
                pl.BlockSpec((tc, Dq, Dq), lambda c, q: (c, 0, 0)),
                pl.BlockSpec((tc, 1), lambda c, q: (c, 0)),
                pl.BlockSpec((tc, 1), lambda c, q: (c, 0)),
                pl.BlockSpec((tc, 1), lambda c, q: (c, 0)),
            ],
            out_specs=pl.BlockSpec((tc, tq), lambda c, q: (c, q)),
        ),
        compiler_params=pltpu.CompilerParams(
            dimension_semantics=("parallel", "parallel"),
            vmem_limit_bytes=_vmem_limit(fp)),
    )(query, mu, sigma_inv_bf16, bias_c, coef_c, invc_c)
    return scores


# ---------------------------------------------------------------------------
# MetaQDA_FB fit glue (consumes Pallas class-stats reductions)
# ---------------------------------------------------------------------------
def metaqda_fb_fit(params, sums, grams, counts, reg_param=0.5):
    D = sums.shape[1]
    Dc = jnp.float32(D)

    m = params["m"]                                        # (1, D)
    kappa_ = jnp.abs(params["kappa"]) + 1e-6
    nu_ = jnp.maximum(params["nu"], Dc - 1.0 + 1e-6)

    # lower_triu = diag(|triu_diag|) + triu_lower * strictly-lower mask
    mask = jnp.tril(jnp.ones((D, D), jnp.float32), k=-1)
    L = jnp.diag(jnp.abs(params["triu_diag"])) + params["triu_lower"] * mask
    LLT = L @ L.T                                          # self_outer(L)
    mTm = m.T @ m                                          # self_outer(m)

    # NOTE: every class in [0, way) must be present in `labels`; a zero count
    # would divide by zero here (matches the reference, which only visits
    # classes that appear in the support labels).
    N = counts                                             # (C,) == N_j
    kN = kappa_ + N
    mean = sums / N[:, None]
    mu = (kappa_ / kN)[:, None] * m + (N / kN)[:, None] * mean          # (C, D)
    mu_outer = mu[:, :, None] * mu[:, None, :]                          # (C, D, D)

    sigma_no_scale = (
        LLT[None] + grams + kappa_ * mTm[None] - kN[:, None, None] * mu_outer
    )
    sigma = (
        sigma_no_scale
        / ((nu_ + N - Dc + 1.0) * kN)[:, None, None]
        * (kN + 1.0)[:, None, None]
    )

    # TODO(synk): matrix inverse, slogdet and lgamma have no clean in-kernel
    # Pallas equivalent on TPU; they remain plain-JAX glue.
    eye = jnp.eye(D, dtype=jnp.float32)
    sigma_inv = (1.0 - reg_param) * jnp.linalg.inv(sigma) + reg_param * eye

    common = nu_ + N + 1.0 - Dc                            # (C,)
    _, logdet = jnp.linalg.slogdet(sigma)
    bias = (
        jax.lax.lgamma(0.5 * (common + Dc))
        - jax.lax.lgamma(0.5 * common)
        - 0.5 * Dc * jnp.log(common)
        - 0.5 * logdet
    )
    return mu, sigma_inv, bias.astype(jnp.float32), common.astype(jnp.float32)


# ---------------------------------------------------------------------------
# MetaQDA.forward equivalent
# ---------------------------------------------------------------------------
def metaqda_forward(params, x, labels, way, shot, reg_param=0.5):
    B = x.shape[0]
    x_flat = x.reshape(B, -1).astype(jnp.float32)          # NCHW -> [B, C*H*W]
    F = x_flat.shape[1]
    D = params["fe_w"].shape[1]

    # ---- Kernel 1: feature extraction (lane-dense D, MXU-sized tiles) -----
    D_fe = _round_up(D, 128)
    tn = 256 if (D_fe >= 256 and D_fe % 256 == 0) else 128
    if F >= 512:
        tk = 512
        F_pad = _round_up(F, tk)
    else:
        F_pad = _round_up(F, 8)
        tk = F_pad                       # full-dim block (legal at any size)
    if B >= 256:
        tm = 256
    elif B >= 128:
        tm = 128
    else:
        tm = _round_up(B, 8)
    B_pad = _round_up(B, tm)

    xp = jnp.pad(x_flat, ((0, B_pad - B), (0, F_pad - F))).astype(jnp.bfloat16)
    wp = jnp.pad(params["fe_w"].astype(jnp.float32),
                 ((0, F_pad - F), (0, D_fe - D))).astype(jnp.bfloat16)
    bp = jnp.pad(params["fe_b"].astype(jnp.float32), ((0, 0), (0, D_fe - D)))

    feats = feature_extractor_pallas(xp, wp, bp, tm=tm, tn=tn, tk=tk)  # (B_pad, D_fe) f32

    # ---- Kernel 2: class stats at the narrow stats width ------------------
    Ns = way * shot
    Nq = B - Ns
    D_stat = _round_up(D, 8)            # 16x cheaper D^2 terms vs padding to 128
    Ns_pad = _round_up(Ns, 8)

    support = jnp.pad(feats[:Ns, :D_stat], ((0, Ns_pad - Ns), (0, 0)))
    onehot = jax.nn.one_hot(labels, way, dtype=jnp.float32)   # (Ns, way)
    counts = jnp.sum(onehot, axis=0)                          # (way,)

    TCS = 8                                                   # class tile (stats)
    C_pad_s = _round_up(way, TCS)
    onehot_t = jnp.pad(onehot.T, ((0, C_pad_s - way), (0, Ns_pad - Ns)))

    sums_p, grams_p = class_stats_pallas(support, onehot_t, tc=TCS)
    sums = sums_p[:way, :D]
    grams = grams_p[:way, :D, :D]

    mu, sigma_inv, bias, common = metaqda_fb_fit(params, sums, grams, counts,
                                                 reg_param)

    # ---- Kernel 3: QDA prediction ------------------------------------------
    coef = -0.5 * (common + D)                               # precomputed glue
    inv_common = 1.0 / common

    TCQ = 8                                                  # class tile (predict)
    C_pad_q = _round_up(way, TCQ)
    if Nq >= 64:
        tq = 128                                             # lane-dense output
        Nq_pad = _round_up(Nq, tq)
    else:
        Nq_pad = _round_up(Nq, 8)
        tq = Nq_pad

    query = jnp.pad(feats[Ns:B, :D_stat], ((0, Nq_pad - Nq), (0, 0)))
    mu_p = jnp.pad(mu, ((0, C_pad_q - way), (0, D_stat - D)))
    si_p = jnp.pad(sigma_inv,
                   ((0, C_pad_q - way), (0, D_stat - D), (0, D_stat - D)))
    si_p = si_p.astype(jnp.bfloat16)     # bf16 stream (numerics tradeoff)
    bias_p = jnp.pad(bias.reshape(way, 1), ((0, C_pad_q - way), (0, 0)))
    coef_p = jnp.pad(coef.reshape(way, 1), ((0, C_pad_q - way), (0, 0)))
    invc_p = jnp.pad(inv_common.reshape(way, 1), ((0, C_pad_q - way), (0, 0)))

    scores = qda_predict_pallas(query, mu_p, si_p, bias_p, coef_p, invc_p,
                                tc=TCQ, tq=tq)               # (C_pad_q, Nq_pad)
    return scores[:way, :Nq].T                               # (Nq, way)


if __name__ == "__main__":
    key = jax.random.PRNGKey(0)
    way, shot, query_shot = 2, 2, 2
    C_in, H_im, W_im = 4, 16, 16
    D = 32                                   # fe_dim / feature_dim
    B = way * shot + way * query_shot        # support + query images

    k1, k2 = jax.random.split(key)
    x = jax.random.normal(k1, (B, C_in, H_im, W_im), jnp.float32)
    labels = jnp.array([i // shot for i in range(way * shot)], jnp.int32)

    # deterministic parameter init (matches MetaQDA_FB.__init__ shapes/values)
    params = dict(
        fe_w=0.05 * jax.random.normal(k2, (C_in * H_im * W_im, D), jnp.float32),
        fe_b=jnp.zeros((1, D), jnp.float32),
        m=jnp.zeros((1, D), jnp.float32),
        kappa=jnp.float32(0.1),
        nu=jnp.float32(D),
        triu_diag=jnp.ones((D,), jnp.float32),
        triu_lower=jnp.eye(D, dtype=jnp.float32),
    )

    out = metaqda_forward(params, x, labels, way, shot)
    out = jax.block_until_ready(out)
    assert out.shape == (way * query_shot, way), out.shape
    assert bool(jnp.all(jnp.isfinite(out)))
    print("KERNEL_OK")
</pallas_src>

<mosaic_0001>
module attributes {stable_mosaic.version = 11 : i64} {
  func.func @kernel(%arg0: i32, %arg1: i32, %arg2: i32, %arg3: memref<8x512xbf16, #tpu.memory_space<vmem>>, %arg4: memref<512x128xbf16, #tpu.memory_space<vmem>>, %arg5: memref<1x128xf32, #tpu.memory_space<vmem>>, %arg6: memref<8x128xf32, #tpu.memory_space<vmem>>) attributes {dimension_semantics = [#tpu.dimension_semantics<parallel>, #tpu.dimension_semantics<parallel>, #tpu.dimension_semantics<arbitrary>], iteration_bounds = array<i64: 1, 1, 2>, scalar_prefetch = 0 : i64, scratch_operands = 0 : i64, tpu.core_type = #tpu.core_type<tc>, window_params = [{transform_indices = @transform_0, window_bounds = array<i64: 8, 512>}, {transform_indices = @transform_1, window_bounds = array<i64: 512, 128>}, {transform_indices = @transform_2, window_bounds = array<i64: 1, 128>}, {transform_indices = @transform_3, window_bounds = array<i64: 8, 128>}]} {
    %c0_i32 = arith.constant 0 : i32
    %0 = arith.cmpi eq, %arg2, %c0_i32 : i32
    %1 = arith.extui %0 : i1 to i32
    %c0_i32_0 = arith.constant 0 : i32
    %2 = arith.cmpi ne, %1, %c0_i32_0 : i32
    scf.if %2 {
      %c0_8 = arith.constant 0 : index
      %c0_9 = arith.constant 0 : index
      %9 = vector.load %arg5[%c0_8, %c0_9] : memref<1x128xf32, #tpu.memory_space<vmem>>, vector<1x128xf32>
      %10 = vector.shape_cast %9 : vector<1x128xf32> to vector<1x128xf32>
      %11 = vector.broadcast %10 : vector<1x128xf32> to vector<8x128xf32>
      %c0_10 = arith.constant 0 : index
      %c0_11 = arith.constant 0 : index
      %12 = vector.load %arg6[%c0_10, %c0_11] : memref<8x128xf32, #tpu.memory_space<vmem>>, vector<8x128xf32>
      tpu.vector_store %arg6[%c0_10, %c0_11], %11 {strides = array<i32>} : memref<8x128xf32, #tpu.memory_space<vmem>>, vector<8x128xf32>,
    } else {
    }
    %c0 = arith.constant 0 : index
    %c0_1 = arith.constant 0 : index
    %3 = vector.load %arg6[%c0, %c0_1] : memref<8x128xf32, #tpu.memory_space<vmem>>, vector<8x128xf32>
    %c0_2 = arith.constant 0 : index
    %c0_3 = arith.constant 0 : index
    %4 = vector.load %arg3[%c0_2, %c0_3] : memref<8x512xbf16, #tpu.memory_space<vmem>>, vector<8x512xbf16>
    %c0_4 = arith.constant 0 : index
    %c0_5 = arith.constant 0 : index
    %5 = vector.load %arg4[%c0_4, %c0_5] : memref<512x128xbf16, #tpu.memory_space<vmem>>, vector<512x128xbf16>
    %cst = arith.constant dense<0.000000e+00> : vector<8x128xf32>
    %6 = tpu.matmul %4, %5, %cst {dimension_numbers = #tpu.dot_dimension_numbers<[1], [0], [0], [1], [0, 0, 1, 1], [], []>} : vector<8x512xbf16>, vector<512x128xbf16>, vector<8x128xf32> -> vector<8x128xf32>
    %7 = arith.addf %3, %6 : vector<8x128xf32>
    %c0_6 = arith.constant 0 : index
    %c0_7 = arith.constant 0 : index
    %8 = vector.load %arg6[%c0_6, %c0_7] : memref<8x128xf32, #tpu.memory_space<vmem>>, vector<8x128xf32>
    tpu.vector_store %arg6[%c0_6, %c0_7], %7 {strides = array<i32>} : memref<8x128xf32, #tpu.memory_space<vmem>>, vector<8x128xf32>,
    return
  }
  func.func @transform_0(%arg0: i32, %arg1: i32, %arg2: i32) -> (i32, i32) {
    %c0_i32 = arith.constant 0 : i32
    return %arg0, %arg2 : i32, i32
  }
  func.func @transform_1(%arg0: i32, %arg1: i32, %arg2: i32) -> (i32, i32) {
    %c0_i32 = arith.constant 0 : i32
    return %arg2, %arg1 : i32, i32
  }
  func.func @transform_2(%arg0: i32, %arg1: i32, %arg2: i32) -> (i32, i32) {
    %c0_i32 = arith.constant 0 : i32
    %c0_i32_0 = arith.constant 0 : i32
    return %c0_i32, %arg1 : i32, i32
  }
  func.func @transform_3(%arg0: i32, %arg1: i32, %arg2: i32) -> (i32, i32) {
    %c0_i32 = arith.constant 0 : i32
    return %arg0, %arg1 : i32, i32
  }
}

</mosaic_0001>

<llo_original>
// kernel: tpu_custom_call.1
$region0: #{tpu_custom_call.1}
  #allocation0 [shape = 'u32[]', space=smem, size = 0x4, offset = 0x4, fixed_abs, tag = 'smem constant byte address 0x4 - core index']
  #allocation1 [shape = 'u32[144,128]{1,0:T(1,128)}', space=vmem, size = 0x12000, scoped, tag = 'internal scratch']
  %s0 = inlined_call_operand.hbm [shape: bf16[8,1024], index: 0, kind: input, shape index: {}]
  %s1 = inlined_call_operand.hbm [shape: bf16[1024,128], index: 1, kind: input, shape index: {}]
  %s2 = inlined_call_operand.vmem [shape: f32[1,128], index: 2, kind: input, shape index: {}]
  %s3 = inlined_call_operand.hbm [shape: f32[8,128], index: 3, kind: output, shape index: {}]
  %s4 = sld [smem:[#allocation0]]
  $region57: #{tpu_custom_call.1} parent=0
    _
  %s6 = ssub.s32 1, %s4
  %s7 = scalar_select 0, %s6, %s4
  $region1: #{tpu_custom_call.1} parent=0
    #allocation2 [shape = 'u8[16384]{0}', space=vmem, size = 0x4000, scoped, tag = 'input window, operand 0']
    #allocation3 [shape = 's32[2]{0}', space=sflag, size = 0x8, scoped, tag = 'scoped memory for tpu_custom_call.1']
    #allocation4 [shape = 's32[2]{0}', space=sflag, size = 0x8, scoped, tag = 'scoped memory for tpu_custom_call.1']
    #allocation5 [shape = 'u8[262144]{0}', space=vmem, size = 0x40000, scoped, tag = 'input window, operand 1']
    #allocation6 [shape = 's32[2]{0}', space=sflag, size = 0x8, scoped, tag = 'scoped memory for tpu_custom_call.1']
    #allocation7 [shape = 'u8[4096]{0}', space=vmem, size = 0x1000, scoped, tag = 'output window, operand 0, single buffered']
    %8 = vsyncpa [#allocation3], 0
    %s9 = scalar_lea.sflag [#allocation3], 1
    %10 = vsyncpa %s9, 0
    %11 = vsyncpa [#allocation6], 0
    %s12 = scalar_lea.sflag [#allocation6], 1
    %13 = vsyncpa %s12, 0
    %14 = vsyncpa [#allocation4], 0
    loop: start=0, step=1, limit=4
    $region2: #{tpu_custom_call.1} parent=1 // loop_pre_header
      _
    $region3: #{tpu_custom_call.1} parent=1 // loop_header
      %s16 = sphi 0, %s20
      %p17 = scmp.ge.s32.totalorder %s16, 4
      %s23 = sphi 0, %s42
      %s24 = sphi 0, %s38
      %s25 = sphi 0, %s34
      %s26 = sphi 0, %s23
      %s27 = sphi 0, %s24
      %s28 = sphi 0, %s25
      %s29 = sphi 0, %s26
      %s30 = sphi 0, %s27
      %s31 = sphi 0, %s28
      %s47 = sphi 0, %s49
      %s50 = sphi 0, %s47
      %s51 = sphi 0, %s50
      %s67 = sphi 0, %s51
      %s75 = sphi 0, %s77
      %s78 = sphi 0, %s75
      %s79 = sphi 0, %s78
      %s95 = sphi 0, %s79
      %s101 = sphi 0, %s103
      %s104 = sphi 0, %s101
      %s105 = sphi 0, %s104
      %s121 = sphi 0, %s105
      %s129 = sphi 0, %s131
      %s132 = sphi 0, %s129
      %s133 = sphi 0, %s132
      %s149 = sphi 0, %s133
    $region4: #{tpu_custom_call.1} parent=1 // loop_header_branch
      %19 = sbr.rel (%p17) target = $region8
    $region5: #{tpu_custom_call.1} parent=1 // loop_body
      %s21 = ssub.s32 %s16, 1
      %s22 = ssub.s32 %s16, 2
      %s32 = sadd.s32 1, %s25
      %p33 = scmp.ge.s32.totalorder %s32, 2
      %s34 = scalar_select %p33, 0, %s32
      %s35 = sadd.s32 1, %s24
      %s36 = scalar_select %p33, %s35, %s24
      %p37 = scmp.ge.s32.totalorder %s36, 1
      %s38 = scalar_select %p37, 0, %s36
      %s39 = sadd.s32 1, %s23
      %s40 = scalar_select %p37, %s39, %s23
      %p41 = scmp.ge.s32.totalorder %s40, 1
      %s42 = scalar_select %p41, 0, %s40
      %s43 = ssub.s32 %s23, %s42
      %s44 = ssub.s32 %s25, %s34
      %s45 = sor.u32 %s43, %s44
      %p46 = scmp.eq.s32.totalorder %s45, 0
      %s48 = sadd.s32 %s47, 1
      %s49 = scalar_select %p46, %s47, %s48
      %p52 = pneg %p46
      %p53 = scmp.eq.s32.totalorder %s16, 1
      %p54 = por %p52, %p53
      %p55 = scmp.ne.s32.totalorder %s47, %s50
      %p56 = scmp.eq.s32.totalorder %s16, 0
      %p57 = por %p55, %p56
      %p58 = scmp.ne.s32.totalorder %s47, %s50
      %p59 = scmp.eq.s32.totalorder %s21, 1
      %p60 = por %p58, %p59
      %p61 = scmp.ne.s32.totalorder %s50, %s51
      %p62 = scmp.eq.s32.totalorder %s21, 0
      %p63 = por %p61, %p62
      %p64 = scmp.ne.s32.totalorder %s50, %s51
      %p65 = scmp.eq.s32.totalorder %s22, 1
      %p66 = por %p64, %p65
      %p68 = scmp.ne.s32.totalorder %s51, %s67
      %p69 = scmp.eq.s32.totalorder %s22, 0
      %p70 = por %p68, %p69
      %s71 = ssub.s32 %s25, %s34
      %s72 = ssub.s32 %s24, %s38
      %s73 = sor.u32 %s71, %s72
      %p74 = scmp.eq.s32.totalorder %s73, 0
      %s76 = sadd.s32 %s75, 1
      %s77 = scalar_select %p74, %s75, %s76
      %p80 = pneg %p74
      %p81 = scmp.eq.s32.totalorder %s16, 1
      %p82 = por %p80, %p81
      %p83 = scmp.ne.s32.totalorder %s75, %s78
      %p84 = scmp.eq.s32.totalorder %s16, 0
      %p85 = por %p83, %p84
      %p86 = scmp.ne.s32.totalorder %s75, %s78
      %p87 = scmp.eq.s32.totalorder %s21, 1
      %p88 = por %p86, %p87
      %p89 = scmp.ne.s32.totalorder %s78, %s79
      %p90 = scmp.eq.s32.totalorder %s21, 0
      %p91 = por %p89, %p90
      %p92 = scmp.ne.s32.totalorder %s78, %s79
      %p93 = scmp.eq.s32.totalorder %s22, 1
      %p94 = por %p92, %p93
      %p96 = scmp.ne.s32.totalorder %s79, %s95
      %p97 = scmp.eq.s32.totalorder %s22, 0
      %p98 = por %p96, %p97
      %s99 = ssub.s32 %s24, %s38
      %p100 = scmp.eq.s32.totalorder %s99, 0
      %s102 = sadd.s32 %s101, 1
      %s103 = scalar_select %p100, %s101, %s102
      %p106 = pneg %p100
      %p107 = scmp.eq.s32.totalorder %s16, 1
      %p108 = por %p106, %p107
      %p109 = scmp.ne.s32.totalorder %s101, %s104
      %p110 = scmp.eq.s32.totalorder %s16, 0
      %p111 = por %p109, %p110
      %p112 = scmp.ne.s32.totalorder %s101, %s104
      %p113 = scmp.eq.s32.totalorder %s21, 1
      %p114 = por %p112, %p113
      %p115 = scmp.ne.s32.totalorder %s104, %s105
      %p116 = scmp.eq.s32.totalorder %s21, 0
      %p117 = por %p115, %p116
      %p118 = scmp.ne.s32.totalorder %s104, %s105
      %p119 = scmp.eq.s32.totalorder %s22, 1
      %p120 = por %p118, %p119
      %p122 = scmp.ne.s32.totalorder %s105, %s121
      %p123 = scmp.eq.s32.totalorder %s22, 0
      %p124 = por %p122, %p123
      %s125 = ssub.s32 %s23, %s42
      %s126 = ssub.s32 %s24, %s38
      %s127 = sor.u32 %s125, %s126
      %p128 = scmp.eq.s32.totalorder %s127, 0
      %s130 = sadd.s32 %s129, 1
      %s131 = scalar_select %p128, %s129, %s130
      %p134 = pneg %p128
      %p135 = scmp.eq.s32.totalorder %s16, 1
      %p136 = por %p134, %p135
      %p137 = scmp.ne.s32.totalorder %s129, %s132
      %p138 = scmp.eq.s32.totalorder %s16, 0
      %p139 = por %p137, %p138
      %p140 = scmp.ne.s32.totalorder %s129, %s132
      %p141 = scmp.eq.s32.totalorder %s21, 1
      %p142 = por %p140, %p141
      %p143 = scmp.ne.s32.totalorder %s132, %s133
      %p144 = scmp.eq.s32.totalorder %s21, 0
      %p145 = por %p143, %p144
      %p146 = scmp.ne.s32.totalorder %s132, %s133
      %p147 = scmp.eq.s32.totalorder %s22, 1
      %p148 = por %p146, %p147
      %p150 = scmp.ne.s32.totalorder %s133, %s149
      %p151 = scmp.eq.s32.totalorder %s22, 0
      %p152 = por %p150, %p151
      %p153 = scmp.le.s32.totalorder 1, %s16
      %p154 = scmp.lt.s32.totalorder %s16, 3
      %p155 = pnand %p153, %p154
      %p156 = pneg %p155
      // Predicated region
      $region9: #{tpu_custom_call.1} parent=5 // pred_check
        _
      $region10: #{tpu_custom_call.1} parent=5 // pred_check_branch
        %158 = sbr.rel (%p155) target = $region12
      $region11: #{tpu_custom_call.1} parent=5 // pred_region
        %s159 = ssub.s32 %s16, 1
        // Predicated region
        $region13: #{tpu_custom_call.1} parent=11 // pred_check
          %p160 = pneg %p117
        $region14: #{tpu_custom_call.1} parent=11 // pred_check_branch
          %162 = sbr.rel (%p160) target = $region16
        $region15: #{tpu_custom_call.1} parent=11 // pred_region
          %p163 = scmp.lt.s32.totalorder %s27, 0
          %s164 = scalar_select %p163, %s27, 0
          %s165 = scalar_lea.vmem %s2, %s164
        $region16: #{tpu_custom_call.1} parent=11 // pred_fallthru
          _
      $region12: #{tpu_custom_call.1} parent=5 // pred_fallthru
        _
      %p166 = scmp.lt.s32.totalorder %s16, 2
      // Predicated region
      $region17: #{tpu_custom_call.1} parent=5 // pred_check
        %p167 = pneg %p166
      $region18: #{tpu_custom_call.1} parent=5 // pred_check_branch
        %169 = sbr.rel (%p167) target = $region20
      $region19: #{tpu_custom_call.1} parent=5 // pred_region
        // Predicated region
        $region21: #{tpu_custom_call.1} parent=19 // pred_check
          %p170 = pneg %p57
        $region22: #{tpu_custom_call.1} parent=19 // pred_check_branch
          %172 = sbr.rel (%p170) target = $region24
        $region23: #{tpu_custom_call.1} parent=19 // pred_region
          %s173 = sand.u32 %s47, 1
          %s174 = scalar_lea.sflag [#allocation3], %s173
          %s175 = sand.u32 %s47, 1
          %s176 = smul.addr %s175, 16
          %s177 = scalar_lea.vmem [#allocation2], %s176
          %s178 = smul.u32 4, %s25
          %s180 = ssub.s32 256, 256
          %181 = vsyncadd %s174, %s180
          %s182 = smul.addr %s23, 8
          %s183 = sadd.s32 %s178, %s182
          %s184 = smul.addr %s183, 64
          %s185 = scalar_lea.hbm %s0, %s184
          %s187 = sshll.u32 %s177, 4
          %s188 = int_to_ptr.vmem [resolvable:$true] %s187
          %190 = dma.hbm_to_vmem [thread:$0]  %s185, 256, %s188, %s174
        $region24: #{tpu_custom_call.1} parent=19 // pred_fallthru
          _
        // Predicated region
        $region25: #{tpu_custom_call.1} parent=19 // pred_check
          %p191 = pneg %p85
        $region26: #{tpu_custom_call.1} parent=19 // pred_check_branch
          %193 = sbr.rel (%p191) target = $region28
        $region27: #{tpu_custom_call.1} parent=19 // pred_region
          %s194 = sand.u32 %s75, 1
          %s195 = scalar_lea.sflag [#allocation6], %s194
          %s196 = sand.u32 %s75, 1
          %s197 = smul.addr %s196, 256
          %s198 = scalar_lea.vmem [#allocation5], %s197
          %s199 = smul.u32 64, %s25
          %s201 = ssub.s32 4096, 4096
          %202 = vsyncadd %s195, %s201
          %s203 = sadd.s32 %s24, %s199
          %s204 = smul.addr %s203, 64
          %s205 = scalar_lea.hbm %s1, %s204
          %s206 = sshll.u32 %s198, 4
          %s207 = int_to_ptr.vmem [resolvable:$true] %s206
          %212 = dma.hbm_to_vmem [thread:$0]  %s205, 4096, %s207, %s195, 64, 64, 4
        $region28: #{tpu_custom_call.1} parent=19 // pred_fallthru
          _
      $region20: #{tpu_custom_call.1} parent=5 // pred_fallthru
        _
      %p213 = scmp.le.s32.totalorder 1, %s16
      %p214 = scmp.lt.s32.totalorder %s16, 3
      %p215 = pnand %p213, %p214
      %p216 = pneg %p215
      // Predicated region
      $region29: #{tpu_custom_call.1} parent=5 // pred_check
        _
      $region30: #{tpu_custom_call.1} parent=5 // pred_check_branch
        %218 = sbr.rel (%p215) target = $region32
      $region31: #{tpu_custom_call.1} parent=5 // pred_region
        %s219 = ssub.s32 %s16, 1
        %s220 = sand.u32 %s50, 1
        %s221 = scalar_lea.sflag [#allocation3], %s220
        %s222 = sand.u32 %s50, 1
        %s223 = smul.addr %s222, 16
        %s224 = scalar_lea.vmem [#allocation2], %s223
        // Predicated region
        $region33: #{tpu_custom_call.1} parent=31 // pred_check
          %p225 = pneg %p63
        $region34: #{tpu_custom_call.1} parent=31 // pred_check_branch
          %227 = sbr.rel (%p225) target = $region36
        $region35: #{tpu_custom_call.1} parent=31 // pred_region
          %228 = dma.done %s221, 256
        $region36: #{tpu_custom_call.1} parent=31 // pred_fallthru
          _
        %s229 = sand.u32 %s78, 1
        %s230 = scalar_lea.sflag [#allocation6], %s229
        %s231 = sand.u32 %s78, 1
        %s232 = smul.addr %s231, 256
        %s233 = scalar_lea.vmem [#allocation5], %s232
        // Predicated region
        $region37: #{tpu_custom_call.1} parent=31 // pred_check
          %p234 = pneg %p91
        $region38: #{tpu_custom_call.1} parent=31 // pred_check_branch
          %236 = sbr.rel (%p234) target = $region40
        $region39: #{tpu_custom_call.1} parent=31 // pred_region
          %237 = dma.done %s230, 4096
        $region40: #{tpu_custom_call.1} parent=31 // pred_fallthru
          _
        %s238 = sand.u32 %s50, 1
        %s239 = scalar_lea.sflag [#allocation3], %s238
        %s240 = sand.u32 %s50, 1
        %s241 = smul.addr %s240, 16
        %s242 = scalar_lea.vmem [#allocation2], %s241
        %p243 = pneg %p63
        %p244 = pneg %p60
        %s245 = sand.u32 %s78, 1
        %s246 = scalar_lea.sflag [#allocation6], %s245
        %s247 = sand.u32 %s78, 1
        %s248 = smul.addr %s247, 256
        %s249 = scalar_lea.vmem [#allocation5], %s248
        %p250 = pneg %p91
        %p251 = pneg %p88
        %p252 = scmp.lt.s32.totalorder %s27, 0
        %s253 = scalar_select %p252, %s27, 0
        %s254 = scalar_lea.vmem %s2, %s253
        %p255 = pneg %p117
        %p256 = pneg %p114
        %p257 = pneg %p145
        %p258 = pneg %p142
        %s259 = smul.u32 4, %s28
        %s260 = smul.u32 64, %s28
        %p261 = scmp.lt.s32.totalorder %s27, 0
        %s262 = scalar_select %p261, %s27, 0
        %s263 = scalar_lea.vmem %s2, %s262
        %p265 = scmp.eq.s32.totalorder %s28, 0
        // Predicated region
        $region41: #{tpu_custom_call.1} parent=31 // pred_check
          %p266 = pneg %p265
        $region42: #{tpu_custom_call.1} parent=31 // pred_check_branch
          %268 = sbr.rel (%p266) target = $region44
        $region43: #{tpu_custom_call.1} parent=31 // pred_region
          %v269 = vld [vmem:[%s263] sm:$0x1]
          %v271 = vlaneseq
          %v272 = vshrl.u32 %v271, 7
          %v273 = vsub.s32 0, %v272
          %v274 = vrot.slane %v269, %v273
          %276 = vst [vmem:[#allocation7] sm:$0xff] %v274
        $region44: #{tpu_custom_call.1} parent=31 // pred_fallthru
          _
        %v277 = vld [vmem:[#allocation7] sm:$0xff]
        %v278 = vld [vmem:[%s224] sm:$0xff]
        %v279 = vld [vmem:[%s224 + $0x8] sm:$0xff]
        %v280 = vld [vmem:[%s233] sm:$0xf]
        %v281 = vld [vmem:[%s233 + $0x4] sm:$0xf]
        %v282 = vld [vmem:[%s233 + $0x8] sm:$0xf]
        %v283 = vld [vmem:[%s233 + $0xc] sm:$0xf]
        %v284 = vld [vmem:[%s233 + $0x10] sm:$0xf]
        %v285 = vld [vmem:[%s233 + $0x14] sm:$0xf]
        %v286 = vld [vmem:[%s233 + $0x18] sm:$0xf]
        %v287 = vld [vmem:[%s233 + $0x1c] sm:$0xf]
        %v288 = vld [vmem:[%s233 + $0x20] sm:$0xf]
        %v289 = vld [vmem:[%s233 + $0x24] sm:$0xf]
        %v290 = vld [vmem:[%s233 + $0x28] sm:$0xf]
        %v291 = vld [vmem:[%s233 + $0x2c] sm:$0xf]
        %v292 = vld [vmem:[%s233 + $0x30] sm:$0xf]
        %v293 = vld [vmem:[%s233 + $0x34] sm:$0xf]
        %v294 = vld [vmem:[%s233 + $0x38] sm:$0xf]
        %v295 = vld [vmem:[%s233 + $0x3c] sm:$0xf]
        %v296 = vld [vmem:[%s233 + $0x40] sm:$0xf]
        %v297 = vld [vmem:[%s233 + $0x44] sm:$0xf]
        %v298 = vld [vmem:[%s233 + $0x48] sm:$0xf]
        %v299 = vld [vmem:[%s233 + $0x4c] sm:$0xf]
        %v300 = vld [vmem:[%s233 + $0x50] sm:$0xf]
        %v301 = vld [vmem:[%s233 + $0x54] sm:$0xf]
        %v302 = vld [vmem:[%s233 + $0x58] sm:$0xf]
        %v303 = vld [vmem:[%s233 + $0x5c] sm:$0xf]
        %v304 = vld [vmem:[%s233 + $0x60] sm:$0xf]
        %v305 = vld [vmem:[%s233 + $0x64] sm:$0xf]
        %v306 = vld [vmem:[%s233 + $0x68] sm:$0xf]
        %v307 = vld [vmem:[%s233 + $0x6c] sm:$0xf]
        %v308 = vld [vmem:[%s233 + $0x70] sm:$0xf]
        %v309 = vld [vmem:[%s233 + $0x74] sm:$0xf]
        %v310 = vld [vmem:[%s233 + $0x78] sm:$0xf]
        %v311 = vld [vmem:[%s233 + $0x7c] sm:$0xf]
        %v312 = vld [vmem:[%s233 + $0x80] sm:$0xf]
        %v313 = vld [vmem:[%s233 + $0x84] sm:$0xf]
        %v314 = vld [vmem:[%s233 + $0x88] sm:$0xf]
        %v315 = vld [vmem:[%s233 + $0x8c] sm:$0xf]
        %v316 = vld [vmem:[%s233 + $0x90] sm:$0xf]
        %v317 = vld [vmem:[%s233 + $0x94] sm:$0xf]
        %v318 = vld [vmem:[%s233 + $0x98] sm:$0xf]
        %v319 = vld [vmem:[%s233 + $0x9c] sm:$0xf]
        %v320 = vld [vmem:[%s233 + $0xa0] sm:$0xf]
        %v321 = vld [vmem:[%s233 + $0xa4] sm:$0xf]
        %v322 = vld [vmem:[%s233 + $0xa8] sm:$0xf]
        %v323 = vld [vmem:[%s233 + $0xac] sm:$0xf]
        %v324 = vld [vmem:[%s233 + $0xb0] sm:$0xf]
        %v325 = vld [vmem:[%s233 + $0xb4] sm:$0xf]
        %v326 = vld [vmem:[%s233 + $0xb8] sm:$0xf]
        %v327 = vld [vmem:[%s233 + $0xbc] sm:$0xf]
        %v328 = vld [vmem:[%s233 + $0xc0] sm:$0xf]
        %v329 = vld [vmem:[%s233 + $0xc4] sm:$0xf]
        %v330 = vld [vmem:[%s233 + $0xc8] sm:$0xf]
        %v331 = vld [vmem:[%s233 + $0xcc] sm:$0xf]
        %v332 = vld [vmem:[%s233 + $0xd0] sm:$0xf]
        %v333 = vld [vmem:[%s233 + $0xd4] sm:$0xf]
        %v334 = vld [vmem:[%s233 + $0xd8] sm:$0xf]
        %v335 = vld [vmem:[%s233 + $0xdc] sm:$0xf]
        %v336 = vld [vmem:[%s233 + $0xe0] sm:$0xf]
        %v337 = vld [vmem:[%s233 + $0xe4] sm:$0xf]
        %v338 = vld [vmem:[%s233 + $0xe8] sm:$0xf]
        %v339 = vld [vmem:[%s233 + $0xec] sm:$0xf]
        %v340 = vld [vmem:[%s233 + $0xf0] sm:$0xf]
        %v341 = vld [vmem:[%s233 + $0xf4] sm:$0xf]
        %v342 = vld [vmem:[%s233 + $0xf8] sm:$0xf]
        %v343 = vld [vmem:[%s233 + $0xfc] sm:$0xf]
        %v346 = vunpack.c.l.b16 %v278
        %v347 = vunpack.c.h.b16 %v278
        %v348 = vunpack.c.l.b16 %v279
        %v349 = vunpack.c.h.b16 %v279
        %v350 = vpack.c.b16 %v346, %v346
        %v351 = vpack.c.b16 %v347, %v347
        %v352 = vpack.c.b16 %v348, %v348
        %v353 = vpack.c.b16 %v349, %v349
        %v422 = vunpack.c.l.b16 %v280
        %v423 = vunpack.c.l.b16 %v281
        %v424 = vunpack.c.l.b16 %v282
        %v425 = vunpack.c.l.b16 %v283
        %v426 = vunpack.c.l.b16 %v284
        %v427 = vunpack.c.l.b16 %v285
        %v428 = vunpack.c.l.b16 %v286
        %v429 = vunpack.c.l.b16 %v287
        %v430 = vunpack.c.l.b16 %v288
        %v431 = vunpack.c.l.b16 %v289
        %v432 = vunpack.c.l.b16 %v290
        %v433 = vunpack.c.l.b16 %v291
        %v434 = vunpack.c.l.b16 %v292
        %v435 = vunpack.c.l.b16 %v293
        %v436 = vunpack.c.l.b16 %v294
        %v437 = vunpack.c.l.b16 %v295
        %v438 = vunpack.c.l.b16 %v296
        %v439 = vunpack.c.l.b16 %v297
        %v440 = vunpack.c.l.b16 %v298
        %v441 = vunpack.c.l.b16 %v299
        %v442 = vunpack.c.l.b16 %v300
        %v443 = vunpack.c.l.b16 %v301
        %v444 = vunpack.c.l.b16 %v302
        %v445 = vunpack.c.l.b16 %v303
        %v446 = vunpack.c.l.b16 %v304
        %v447 = vunpack.c.l.b16 %v305
        %v448 = vunpack.c.l.b16 %v306
        %v449 = vunpack.c.l.b16 %v307
        %v450 = vunpack.c.l.b16 %v308
        %v451 = vunpack.c.l.b16 %v309
        %v452 = vunpack.c.l.b16 %v310
        %v453 = vunpack.c.l.b16 %v311
        %v454 = vunpack.c.l.b16 %v312
        %v455 = vunpack.c.l.b16 %v313
        %v456 = vunpack.c.l.b16 %v314
        %v457 = vunpack.c.l.b16 %v315
        %v458 = vunpack.c.l.b16 %v316
        %v459 = vunpack.c.l.b16 %v317
        %v460 = vunpack.c.l.b16 %v318
        %v461 = vunpack.c.l.b16 %v319
        %v462 = vunpack.c.l.b16 %v320
        %v463 = vunpack.c.l.b16 %v321
        %v464 = vunpack.c.l.b16 %v322
        %v465 = vunpack.c.l.b16 %v323
        %v466 = vunpack.c.l.b16 %v324
        %v467 = vunpack.c.l.b16 %v325
        %v468 = vunpack.c.l.b16 %v326
        %v469 = vunpack.c.l.b16 %v327
        %v470 = vunpack.c.l.b16 %v328
        %v471 = vunpack.c.l.b16 %v329
        %v472 = vunpack.c.l.b16 %v330
        %v473 = vunpack.c.l.b16 %v331
        %v474 = vunpack.c.l.b16 %v332
        %v475 = vunpack.c.l.b16 %v333
        %v476 = vunpack.c.l.b16 %v334
        %v477 = vunpack.c.l.b16 %v335
        %v478 = vunpack.c.l.b16 %v336
        %v479 = vunpack.c.l.b16 %v337
        %v480 = vunpack.c.l.b16 %v338
        %v481 = vunpack.c.l.b16 %v339
        %v482 = vunpack.c.l.b16 %v340
        %v483 = vunpack.c.l.b16 %v341
        %v484 = vunpack.c.l.b16 %v342
        %v485 = vunpack.c.l.b16 %v343
        %v486 = vpack.c.b16 %v423, %v422
        %v487 = vpack.c.b16 %v425, %v424
        %v488 = vpack.c.b16 %v427, %v426
        %v489 = vpack.c.b16 %v429, %v428
        %v490 = vpack.c.b16 %v431, %v430
        %v491 = vpack.c.b16 %v433, %v432
        %v492 = vpack.c.b16 %v435, %v434
        %v493 = vpack.c.b16 %v437, %v436
        %v494 = vpack.c.b16 %v439, %v438
        %v495 = vpack.c.b16 %v441, %v440
        %v496 = vpack.c.b16 %v443, %v442
        %v497 = vpack.c.b16 %v445, %v444
        %v498 = vpack.c.b16 %v447, %v446
        %v499 = vpack.c.b16 %v449, %v448
        %v500 = vpack.c.b16 %v451, %v450
        %v501 = vpack.c.b16 %v453, %v452
        %v502 = vpack.c.b16 %v455, %v454
        %v503 = vpack.c.b16 %v457, %v456
        %v504 = vpack.c.b16 %v459, %v458
        %v505 = vpack.c.b16 %v461, %v460
        %v506 = vpack.c.b16 %v463, %v462
        %v507 = vpack.c.b16 %v465, %v464
        %v508 = vpack.c.b16 %v467, %v466
        %v509 = vpack.c.b16 %v469, %v468
        %v510 = vpack.c.b16 %v471, %v470
        %v511 = vpack.c.b16 %v473, %v472
        %v512 = vpack.c.b16 %v475, %v474
        %v513 = vpack.c.b16 %v477, %v476
        %v514 = vpack.c.b16 %v479, %v478
        %v515 = vpack.c.b16 %v481, %v480
        %v516 = vpack.c.b16 %v483, %v482
        %v517 = vpack.c.b16 %v485, %v484
        %550 = vmatprep.subr.bf16.mxu0 0
        %551 = vmatpush1.bf16.msra.mxu0 %v493
        %552 = vmatprep.subr.bf16.mxu0 0
        %553 = vmatpush1.bf16.msra.mxu0 %v492
        %554 = vmatprep.subr.bf16.mxu0 0
        %555 = vmatpush1.bf16.msra.mxu0 %v491
        %556 = vmatprep.subr.bf16.mxu0 0
        %557 = vmatpush1.bf16.msra.mxu0 %v490
        %558 = vmatprep.subr.bf16.mxu0 0
        %559 = vmatpush1.bf16.msra.mxu0 %v489
        %560 = vmatprep.subr.bf16.mxu0 0
        %561 = vmatpush1.bf16.msra.mxu0 %v488
        %562 = vmatprep.subr.bf16.mxu0 0
        %563 = vmatpush1.bf16.msra.mxu0 %v487
        %564 = vmatprep.subr.bf16.mxu0 0
        %565 = vmatpush1.bf16.msra.mxu0 %v486
        %566 = vmatprep.subr.bf16.mxu0 0
        %567 = vmatpush2.bf16.msra.mxu0 %v501
        %568 = vmatprep.subr.bf16.mxu0 0
        %569 = vmatpush2.bf16.msra.mxu0 %v500
        %570 = vmatprep.subr.bf16.mxu0 0
        %571 = vmatpush2.bf16.msra.mxu0 %v499
        %572 = vmatprep.subr.bf16.mxu0 0
        %573 = vmatpush2.bf16.msra.mxu0 %v498
        %574 = vmatprep.subr.bf16.mxu0 0
        %575 = vmatpush2.bf16.msra.mxu0 %v497
        %576 = vmatprep.subr.bf16.mxu0 0
        %577 = vmatpush2.bf16.msra.mxu0 %v496
        %578 = vmatprep.subr.bf16.mxu0 0
        %579 = vmatpush2.bf16.msra.mxu0 %v495
        %580 = vmatprep.subr.bf16.mxu0 0
        %581 = vmatpush2.bf16.msra.mxu0 %v494
        %582 = vmatprep.mubr.bf16.mxu0 %v351
        %583 = vmatmul.mubr.bf16.gmra.mxu0 %v350
        %v584 = vpop.f32.mrf.mxu0
        %v585 = vadd.f32 0.0, %v584
        %v586 = vpop.f32.mrf.mxu0
        %v587 = vpop.f32.mrf.mxu0
        %v588 = vpop.f32.mrf.mxu0
        %589 = vdwg.mxu0
        %590 = vmatprep.subr.bf16.mxu0 0
        %591 = vmatpush1.bf16.msra.mxu0 %v509
        %592 = vmatprep.subr.bf16.mxu0 0
        %593 = vmatpush1.bf16.msra.mxu0 %v508
        %594 = vmatprep.subr.bf16.mxu0 0
        %595 = vmatpush1.bf16.msra.mxu0 %v507
        %596 = vmatprep.subr.bf16.mxu0 0
        %597 = vmatpush1.bf16.msra.mxu0 %v506
        %598 = vmatprep.subr.bf16.mxu0 0
        %599 = vmatpush1.bf16.msra.mxu0 %v505
        %600 = vmatprep.subr.bf16.mxu0 0
        %601 = vmatpush1.bf16.msra.mxu0 %v504
        %602 = vmatprep.subr.bf16.mxu0 0
        %603 = vmatpush1.bf16.msra.mxu0 %v503
        %604 = vmatprep.subr.bf16.mxu0 0
        %605 = vmatpush1.bf16.msra.mxu0 %v502
        %606 = vmatprep.subr.bf16.mxu0 0
        %607 = vmatpush2.bf16.msra.mxu0 %v517
        %608 = vmatprep.subr.bf16.mxu0 0
        %609 = vmatpush2.bf16.msra.mxu0 %v516
        %610 = vmatprep.subr.bf16.mxu0 0
        %611 = vmatpush2.bf16.msra.mxu0 %v515
        %612 = vmatprep.subr.bf16.mxu0 0
        %613 = vmatpush2.bf16.msra.mxu0 %v514
        %614 = vmatprep.subr.bf16.mxu0 0
        %615 = vmatpush2.bf16.msra.mxu0 %v513
        %616 = vmatprep.subr.bf16.mxu0 0
        %617 = vmatpush2.bf16.msra.mxu0 %v512
        %618 = vmatprep.subr.bf16.mxu0 0
        %619 = vmatpush2.bf16.msra.mxu0 %v511
        %620 = vmatprep.subr.bf16.mxu0 0
        %621 = vmatpush2.bf16.msra.mxu0 %v510
        %622 = vmatprep.mubr.bf16.mxu0 %v353
        %623 = vmatmul.mubr.bf16.gmra.mxu0 %v352
        %v624 = vpop.f32.mrf.mxu0
        %v625 = vadd.f32 %v585, %v624
        %v626 = vpop.f32.mrf.mxu0
        %v627 = vpop.f32.mrf.mxu0
        %v628 = vpop.f32.mrf.mxu0
        %629 = vdwg.mxu0
        %v630 = vadd.f32 %v277, %v625
        %631 = vst [vmem:[#allocation7] sm:$0xff] %v630
        // Predicated region
        $region45: #{tpu_custom_call.1} parent=31 // pred_check
          %p632 = pneg %p142
        $region46: #{tpu_custom_call.1} parent=31 // pred_check_branch
          %634 = sbr.rel (%p632) target = $region48
        $region47: #{tpu_custom_call.1} parent=31 // pred_region
          %s636 = ssub.s32 128, 128
          %637 = vsyncadd [#allocation4], %s636
          %s638 = sadd.s32 %s27, %s26
          %s639 = smul.addr %s638, 128
          %s640 = scalar_lea.hbm %s3, %s639
          %s642 = sshll.u32 [#allocation7], 4
          %s643 = int_to_ptr.vmem [resolvable:$true] %s642
          %645 = dma.vmem_to_hbm [thread:$0]  %s643, 128, %s640, [#allocation4]
        $region48: #{tpu_custom_call.1} parent=31 // pred_fallthru
          _
        // Predicated region
        $region49: #{tpu_custom_call.1} parent=31 // pred_check
          %p646 = pneg %p142
        $region50: #{tpu_custom_call.1} parent=31 // pred_check_branch
          %648 = sbr.rel (%p646) target = $region52
        $region51: #{tpu_custom_call.1} parent=31 // pred_region
          %649 = dma.done [#allocation4], 128
        $region52: #{tpu_custom_call.1} parent=31 // pred_fallthru
          _
      $region32: #{tpu_custom_call.1} parent=5 // pred_fallthru
        _
      %p650 = scmp.le.s32.totalorder 2, %s16
      // Predicated region
      $region53: #{tpu_custom_call.1} parent=5 // pred_check
        %p651 = pneg %p650
      $region54: #{tpu_custom_call.1} parent=5 // pred_check_branch
        %653 = sbr.rel (%p651) target = $region56
      $region55: #{tpu_custom_call.1} parent=5 // pred_region
        %s654 = ssub.s32 %s16, 2
      $region56: #{tpu_custom_call.1} parent=5 // pred_fallthru
        _
    $region6: #{tpu_custom_call.1} parent=1 // loop_footer
      %s20 = sadd.s32 1, %s16
    $region7: #{tpu_custom_call.1} parent=1 // loop_footer_branch
      %15 = sbr.rel target = $region3
    $region8: #{tpu_custom_call.1} parent=1 // loop_exit
      _
    %655 = vsyncpa [#allocation3], 1
    %s656 = scalar_lea.sflag [#allocation3], 1
    %657 = vsyncpa %s656, 1
    %658 = vsyncpa [#allocation6], 1
    %s659 = scalar_lea.sflag [#allocation6], 1
    %660 = vsyncpa %s659, 1
    %661 = vsyncpa [#allocation4], 1
    %s662 = scalar_lea.sflag [#allocation4], 1
    %663 = vsyncpa %s662, 1

</llo_original>
